<compile_context>
chip_gen: v7x
topology: tpu7x:2x2x1
jax: 0.10.0
libtpu: 0.0.40
codegen_flags: <defaults>
</compile_context>

<pallas_src>
import functools

import jax
import jax.numpy as jnp
import numpy as np
from jax.experimental import pallas as pl
from jax.experimental.pallas import tpu as pltpu

M_POS = 0.9
M_NEG = 0.1
W_NEG = 0.5
W_RECON = 0.0005

_SUB = 8      # sublanes per f32 vreg
_LANE = 128   # lanes per vreg


def _capsnet_loss_kernel(prob_ref, target_ref, recon_ref, image_ref, out_ref,
                         *, batch_size, num_classes, row_chunk):
    tb, c = prob_ref.shape
    d = recon_ref.shape[1]

    row = row_chunk                 # 8 (f32/i32 inputs) or 16 (bf16/f16 inputs)
    n_row = tb // row               # wrapper guarantees tb % row == 0
    n_col = d // _LANE
    rem = d - n_col * _LANE

    margin_scale = 1.0 / float(batch_size * num_classes)   # torch .mean() over (B, C)
    recon_scale = W_RECON / float(batch_size)

    # Loop-invariant iota, hoisted out of the row loop (JAX does not CSE it).
    cls_ids = jax.lax.broadcasted_iota(jnp.int32, (row, c), 1)

    acc0 = jnp.zeros((row, _LANE), jnp.float32)      # streamed SSE accumulator
    macc0 = jnp.zeros((row, c), jnp.float32)         # streamed margin accumulator
    if rem:
        carry0 = (acc0, macc0, jnp.zeros((row, rem), jnp.float32))
    else:
        carry0 = (acc0, macc0)

    col_unroll = max(1, min(n_col, 4))

    def row_body(r, carry):
        if rem:
            acc, macc, tail = carry
        else:
            acc, macc = carry
        r0 = pl.multiple_of(r * row, row)

        # ---- margin term for this row chunk (tiny: (row, C)) --------------
        p = prob_ref[pl.ds(r0, row), :].astype(jnp.float32)        # (row, C)
        t = target_ref[pl.ds(r0, row), :]                          # (row, 1) int32
        onehot = (cls_ids == t).astype(jnp.float32)                # padded rows (t=-1) -> 0
        pos = jnp.maximum(M_POS - p, 0.0)
        neg = jnp.maximum(p - M_NEG, 0.0)
        macc = macc + onehot * pos * pos + W_NEG * (1.0 - onehot) * neg * neg

        # ---- streamed squared reconstruction error (dominant) -------------
        if n_col:
            def col_body(j, a):
                c0 = pl.multiple_of(j * _LANE, _LANE)
                rr = recon_ref[pl.ds(r0, row), pl.ds(c0, _LANE)].astype(jnp.float32)
                ii = image_ref[pl.ds(r0, row), pl.ds(c0, _LANE)].astype(jnp.float32)
                dd = rr - ii
                return a + dd * dd
            acc = jax.lax.fori_loop(0, n_col, col_body, acc, unroll=col_unroll)

        if rem:
            rr = recon_ref[pl.ds(r0, row), pl.ds(n_col * _LANE, rem)].astype(jnp.float32)
            ii = image_ref[pl.ds(r0, row), pl.ds(n_col * _LANE, rem)].astype(jnp.float32)
            dd = rr - ii
            tail = tail + dd * dd
            return acc, macc, tail
        return acc, macc

    carry = jax.lax.fori_loop(0, n_row, row_body, carry0)
    if rem:
        acc, macc, tail = carry
    else:
        acc, macc = carry

    # Fold 16-row accumulators (bf16 row chunks) down to the (8,128) output shape.
    if row == 2 * _SUB:
        acc = acc[:_SUB, :] + acc[_SUB:, :]

    scalar_extra = jnp.sum(macc) * margin_scale
    if rem:
        scalar_extra = scalar_extra + recon_scale * jnp.sum(tail)

    partial = recon_scale * acc
    # Place the tiny scalar (margin + lane-tail) into element (0,0) once per tile.
    row_ids = jax.lax.broadcasted_iota(jnp.int32, (_SUB, _LANE), 0)
    col_ids = jax.lax.broadcasted_iota(jnp.int32, (_SUB, _LANE), 1)
    partial = partial + jnp.where((row_ids == 0) & (col_ids == 0), scalar_extra, 0.0)
    out_ref[0, :, :] = partial


def capsnet_loss(probability, target, reconstruction, image, *, max_tile_rows=None):
    """Total CapsNet loss. Returns a scalar f32.

    probability     : (B, C)   class capsule lengths
    target          : (B,)     int class indices
    reconstruction  : (B, D)   decoder output, D = prod(image.shape[1:])
    image           : (B, ...) original image (contiguous; flattened here)
    """
    b = image.shape[0]
    c = probability.shape[1]
    d = int(np.prod(image.shape[1:]))
    assert reconstruction.shape == (b, d)

    # Metadata-only reshape for contiguous inputs (no HBM copy); cast in-kernel.
    image_flat = image.reshape(b, d)
    target2d = target.astype(jnp.int32).reshape(b, 1)

    r_item = np.dtype(reconstruction.dtype).itemsize
    i_item = np.dtype(image_flat.dtype).itemsize
    p_item = np.dtype(probability.dtype).itemsize

    # 16-row chunks for 16-bit recon/image (matches bf16 sublane packing); else 8.
    row_chunk = 16 if (r_item == 2 and i_item == 2) else _SUB

    # ---- generation-aware VMEM budget --------------------------------------
    try:
        phys_vmem = int(getattr(pltpu.get_tpu_info(), "vmem_capacity_bytes", 0)) or (64 << 20)
    except Exception:  # fall back to the most conservative (v7x) capacity
        phys_vmem = 64 << 20
    vmem_limit = min((phys_vmem * 3) // 4, 96 << 20)        # 48 MiB on v7x, 96 MiB on v5e/v6e
    block_budget = max(8 << 20, vmem_limit - (8 << 20))     # bytes for double-buffered blocks

    def _lane_pad(n):
        return ((n + _LANE - 1) // _LANE) * _LANE

    # VMEM cost per batch row (lane-padded layout) for one buffer set.
    row_vmem = (_lane_pad(d) * (r_item + i_item) + _lane_pad(c) * p_item + _LANE * 4)
    rows_cap = max(row_chunk, int(block_budget // (2 * row_vmem)))   # 2x for double buffering
    rows_cap = (rows_cap // row_chunk) * row_chunk
    if max_tile_rows is not None:
        rows_cap = max(row_chunk, min(rows_cap, (int(max_tile_rows) // row_chunk) * row_chunk))

    b_rounded = ((b + row_chunk - 1) // row_chunk) * row_chunk
    num_tiles = max(1, -(-b_rounded // rows_cap))
    # Use both TensorCores on v7x (parallel grid) whenever the batch allows >=2 tiles.
    if num_tiles == 1 and b_rounded >= 2 * row_chunk:
        num_tiles = 2
    tb = -(-b_rounded // num_tiles)
    tb = ((tb + row_chunk - 1) // row_chunk) * row_chunk
    b_pad = tb * num_tiles

    if b_pad != b:
        pad = b_pad - b
        # Padded rows contribute exactly 0 to both loss terms (target=-1, zero data).
        probability = jnp.pad(probability, ((0, pad), (0, 0)))
        target2d = jnp.pad(target2d, ((0, pad), (0, 0)), constant_values=-1)
        reconstruction = jnp.pad(reconstruction, ((0, pad), (0, 0)))
        image_flat = jnp.pad(image_flat, ((0, pad), (0, 0)))

    kernel = functools.partial(_capsnet_loss_kernel, batch_size=b, num_classes=c,
                               row_chunk=row_chunk)

    bytes_accessed = (b_pad * d * (r_item + i_item)
                      + b_pad * c * p_item
                      + b_pad * 4
                      + num_tiles * _SUB * _LANE * 4)
    cost = pl.CostEstimate(flops=int(3 * b_pad * d + 12 * b_pad * c),
                           transcendentals=0,
                           bytes_accessed=int(bytes_accessed))

    partials = pl.pallas_call(
        kernel,
        out_shape=jax.ShapeDtypeStruct((num_tiles, _SUB, _LANE), jnp.float32),
        grid_spec=pltpu.PrefetchScalarGridSpec(
            num_scalar_prefetch=0,
            grid=(num_tiles,),
            in_specs=[
                pl.BlockSpec((tb, c), lambda i: (i, 0)),   # probability
                pl.BlockSpec((tb, 1), lambda i: (i, 0)),   # target
                pl.BlockSpec((tb, d), lambda i: (i, 0)),   # reconstruction
                pl.BlockSpec((tb, d), lambda i: (i, 0)),   # image (flattened)
            ],
            out_specs=pl.BlockSpec((1, _SUB, _LANE), lambda i: (i, 0, 0)),
        ),
        compiler_params=pltpu.CompilerParams(
            dimension_semantics=("parallel",),
            vmem_limit_bytes=int(vmem_limit),
        ),
        cost_estimate=cost,
    )(probability, target2d, reconstruction, image_flat)

    # Tiny final reduction of per-tile vreg partials (already fully weighted).
    return jnp.sum(partials)


def _reference_loss(probability, target, reconstruction, image):
    b, c = probability.shape
    onehot = jax.nn.one_hot(target, c, dtype=jnp.float32)
    prob = probability.astype(jnp.float32)
    pos = jnp.maximum(M_POS - prob, 0.0) ** 2
    neg = jnp.maximum(prob - M_NEG, 0.0) ** 2
    margin = jnp.mean(onehot * pos + W_NEG * (1.0 - onehot) * neg)
    img_flat = image.reshape(b, -1).astype(jnp.float32)
    sse = jnp.sum((reconstruction.astype(jnp.float32) - img_flat) ** 2)
    return margin + W_RECON * sse / b


if __name__ == "__main__":
    NUM_CLASSES = 10

    # --- case 1: small f32 batch, D multiple of 128, single-tile path ------
    k1, k2, k3, k4 = jax.random.split(jax.random.PRNGKey(0), 4)
    B, C, H, W = 2, 1, 16, 16
    D = C * H * W
    probability = jax.random.uniform(k1, (B, NUM_CLASSES), dtype=jnp.float32)
    target = jax.random.randint(k2, (B,), 0, NUM_CLASSES, dtype=jnp.int32)
    image = jax.random.uniform(k3, (B, C, H, W), dtype=jnp.float32)
    reconstruction = jax.random.uniform(k4, (B, D), dtype=jnp.float32)

    loss = capsnet_loss(probability, target, reconstruction, image)
    jax.block_until_ready(loss)
    ref = _reference_loss(probability, target, reconstruction, image)
    assert jnp.allclose(loss, ref, rtol=1e-5, atol=1e-5), (loss, ref)

    # --- case 2: gridded + padded path, D NOT a multiple of 128 (tail lanes) -
    k5, k6, k7, k8 = jax.random.split(jax.random.PRNGKey(1), 4)
    B2, H2, W2 = 20, 14, 14
    D2 = 1 * H2 * W2
    prob2 = jax.random.uniform(k5, (B2, NUM_CLASSES), dtype=jnp.float32)
    tgt2 = jax.random.randint(k6, (B2,), 0, NUM_CLASSES, dtype=jnp.int32)
    img2 = jax.random.uniform(k7, (B2, 1, H2, W2), dtype=jnp.float32)
    rec2 = jax.random.uniform(k8, (B2, D2), dtype=jnp.float32)

    loss2 = capsnet_loss(prob2, tgt2, rec2, img2, max_tile_rows=8)
    jax.block_until_ready(loss2)
    ref2 = _reference_loss(prob2, tgt2, rec2, img2)
    assert jnp.allclose(loss2, ref2, rtol=1e-5, atol=1e-5), (loss2, ref2)

    # --- case 3: bf16 recon/image -> 16-row streaming chunks ----------------
    k9, k10, k11, k12 = jax.random.split(jax.random.PRNGKey(2), 4)
    B3 = 4
    prob3 = jax.random.uniform(k9, (B3, NUM_CLASSES), dtype=jnp.float32)
    tgt3 = jax.random.randint(k10, (B3,), 0, NUM_CLASSES, dtype=jnp.int32)
    img3 = jax.random.uniform(k11, (B3, 1, 16, 16), dtype=jnp.float32).astype(jnp.bfloat16)
    rec3 = jax.random.uniform(k12, (B3, 256), dtype=jnp.float32).astype(jnp.bfloat16)

    loss3 = capsnet_loss(prob3, tgt3, rec3, img3)
    jax.block_until_ready(loss3)
    ref3 = _reference_loss(prob3, tgt3, rec3, img3)
    assert jnp.allclose(loss3, ref3, rtol=2e-5, atol=2e-5), (loss3, ref3)

    print("KERNEL_OK")
</pallas_src>

<mosaic_0001>
module attributes {stable_mosaic.version = 11 : i64} {
  func.func @_capsnet_loss_kernel(%arg0: i32, %arg1: memref<8x10xf32, #tpu.memory_space<vmem>>, %arg2: memref<8x1xi32, #tpu.memory_space<vmem>>, %arg3: memref<8x256xf32, #tpu.memory_space<vmem>>, %arg4: memref<8x256xf32, #tpu.memory_space<vmem>>, %arg5: memref<1x8x128xf32, #tpu.memory_space<vmem>>) attributes {dimension_semantics = [#tpu.dimension_semantics<parallel>], iteration_bounds = array<i64: 1>, scalar_prefetch = 0 : i64, scratch_operands = 0 : i64, tpu.core_type = #tpu.core_type<tc>, window_params = [{transform_indices = @transform_0, window_bounds = array<i64: 8, 10>}, {transform_indices = @transform_1, window_bounds = array<i64: 8, 1>}, {transform_indices = @transform_2, window_bounds = array<i64: 8, 256>}, {transform_indices = @transform_3, window_bounds = array<i64: 8, 256>}, {transform_indices = @transform_4, window_bounds = array<i64: 1, 8, 128>}]} {
    %0 = tpu.iota {dimensions = array<i32: 1>} : vector<8x10xi32>
    %cst = arith.constant 0.000000e+00 : f32
    %1 = vector.broadcast %cst : f32 to vector<8x128xf32>
    %cst_0 = arith.constant 0.000000e+00 : f32
    %2 = vector.broadcast %cst_0 : f32 to vector<8x10xf32>
    %c0_i32 = arith.constant 0 : i32
    %c8_i32 = arith.constant 8 : i32
    %3 = arith.muli %c0_i32, %c8_i32 : i32
    %4 = tpu.assume_multiple %3, 8 : i32
    %5 = arith.index_cast %4 : i32 to index
    %c0 = arith.constant 0 : index
    %6 = vector.load %arg1[%5, %c0] : memref<8x10xf32, #tpu.memory_space<vmem>>, vector<8x10xf32>
    %7 = arith.index_cast %4 : i32 to index
    %c0_1 = arith.constant 0 : index
    %8 = vector.load %arg2[%7, %c0_1] : memref<8x1xi32, #tpu.memory_space<vmem>>, vector<8x1xi32>
    %9 = vector.broadcast %8 : vector<8x1xi32> to vector<8x10xi32>
    %10 = arith.cmpi eq, %0, %9 : vector<8x10xi32>
    %11 = arith.extui %10 : vector<8x10xi1> to vector<8x10xi32>
    %12 = arith.sitofp %11 : vector<8x10xi32> to vector<8x10xf32>
    %cst_2 = arith.constant 0.899999976 : f32
    %13 = vector.broadcast %cst_2 : f32 to vector<8x10xf32>
    %14 = arith.subf %13, %6 : vector<8x10xf32>
    %cst_3 = arith.constant 0.000000e+00 : f32
    %15 = vector.broadcast %cst_3 : f32 to vector<8x10xf32>
    %16 = arith.maximumf %14, %15 : vector<8x10xf32>
    %cst_4 = arith.constant 1.000000e-01 : f32
    %17 = vector.broadcast %cst_4 : f32 to vector<8x10xf32>
    %18 = arith.subf %6, %17 : vector<8x10xf32>
    %cst_5 = arith.constant 0.000000e+00 : f32
    %19 = vector.broadcast %cst_5 : f32 to vector<8x10xf32>
    %20 = arith.maximumf %18, %19 : vector<8x10xf32>
    %21 = arith.mulf %12, %16 : vector<8x10xf32>
    %22 = arith.mulf %21, %16 : vector<8x10xf32>
    %23 = arith.addf %2, %22 : vector<8x10xf32>
    %cst_6 = arith.constant 1.000000e+00 : f32
    %24 = vector.broadcast %cst_6 : f32 to vector<8x10xf32>
    %25 = arith.subf %24, %12 : vector<8x10xf32>
    %cst_7 = arith.constant 5.000000e-01 : f32
    %26 = vector.broadcast %cst_7 : f32 to vector<8x10xf32>
    %27 = arith.mulf %26, %25 : vector<8x10xf32>
    %28 = arith.mulf %27, %20 : vector<8x10xf32>
    %29 = arith.mulf %28, %20 : vector<8x10xf32>
    %30 = arith.addf %23, %29 : vector<8x10xf32>
    %c0_i32_8 = arith.constant 0 : i32
    %c128_i32 = arith.constant 128 : i32
    %31 = arith.muli %c0_i32_8, %c128_i32 : i32
    %32 = tpu.assume_multiple %31, 128 : i32
    %33 = arith.index_cast %4 : i32 to index
    %34 = arith.index_cast %32 : i32 to index
    %35 = vector.load %arg3[%33, %34] : memref<8x256xf32, #tpu.memory_space<vmem>>, vector<8x128xf32>
    %36 = arith.index_cast %4 : i32 to index
    %37 = arith.index_cast %32 : i32 to index
    %38 = vector.load %arg4[%36, %37] : memref<8x256xf32, #tpu.memory_space<vmem>>, vector<8x128xf32>
    %39 = arith.subf %35, %38 : vector<8x128xf32>
    %40 = arith.mulf %39, %39 : vector<8x128xf32>
    %41 = arith.addf %1, %40 : vector<8x128xf32>
    %c1_i32 = arith.constant 1 : i32
    %c128_i32_9 = arith.constant 128 : i32
    %42 = arith.muli %c1_i32, %c128_i32_9 : i32
    %43 = tpu.assume_multiple %42, 128 : i32
    %44 = arith.index_cast %4 : i32 to index
    %45 = arith.index_cast %43 : i32 to index
    %46 = vector.load %arg3[%44, %45] : memref<8x256xf32, #tpu.memory_space<vmem>>, vector<8x128xf32>
    %47 = arith.index_cast %4 : i32 to index
    %48 = arith.index_cast %43 : i32 to index
    %49 = vector.load %arg4[%47, %48] : memref<8x256xf32, #tpu.memory_space<vmem>>, vector<8x128xf32>
    %50 = arith.subf %46, %49 : vector<8x128xf32>
    %51 = arith.mulf %50, %50 : vector<8x128xf32>
    %52 = arith.addf %41, %51 : vector<8x128xf32>
    %c2_i32 = arith.constant 2 : i32
    %c1_i32_10 = arith.constant 1 : i32
    %53 = vector.shape_cast %30 : vector<8x10xf32> to vector<1x8x10xf32>
    %cst_11 = arith.constant dense<0.000000e+00> : vector<1xf32>
    %54 = vector.multi_reduction <add>, %53, %cst_11 [1, 2] : vector<1x8x10xf32> to vector<1xf32>
    %55 = vector.shape_cast %54 : vector<1xf32> to vector<1x1x1xf32>
    %56 = vector.extract %55[0, 0, 0] : f32 from vector<1x1x1xf32>
    %cst_12 = arith.constant 5.000000e-02 : f32
    %57 = arith.mulf %56, %cst_12 : f32
    %cst_13 = arith.constant 2.500000e-04 : f32
    %58 = vector.broadcast %cst_13 : f32 to vector<8x128xf32>
    %59 = arith.mulf %58, %52 : vector<8x128xf32>
    %60 = tpu.iota {dimensions = array<i32: 0>} : vector<8x128xi32>
    %61 = tpu.iota {dimensions = array<i32: 1>} : vector<8x128xi32>
    %c0_i32_14 = arith.constant 0 : i32
    %62 = vector.broadcast %c0_i32_14 : i32 to vector<8x128xi32>
    %63 = arith.cmpi eq, %60, %62 : vector<8x128xi32>
    %c0_i32_15 = arith.constant 0 : i32
    %64 = vector.broadcast %c0_i32_15 : i32 to vector<8x128xi32>
    %65 = arith.cmpi eq, %61, %64 : vector<8x128xi32>
    %66 = arith.andi %63, %65 : vector<8x128xi1>
    %cst_16 = arith.constant 0.000000e+00 : f32
    %67 = vector.broadcast %57 : f32 to vector<8x128xf32>
    %68 = vector.broadcast %cst_16 : f32 to vector<8x128xf32>
    %69 = arith.select %66, %67, %68 : vector<8x128xi1>, vector<8x128xf32>
    %70 = arith.addf %59, %69 : vector<8x128xf32>
    %c0_17 = arith.constant 0 : index
    %c0_18 = arith.constant 0 : index
    %c0_19 = arith.constant 0 : index
    %71 = vector.load %arg5[%c0_17, %c0_18, %c0_19] : memref<1x8x128xf32, #tpu.memory_space<vmem>>, vector<1x8x128xf32>
    %72 = vector.shape_cast %71 : vector<1x8x128xf32> to vector<8x128xf32>
    %73 = vector.shape_cast %70 : vector<8x128xf32> to vector<1x8x128xf32>
    tpu.vector_store %arg5[%c0_17, %c0_18, %c0_19], %73 {strides = array<i32>} : memref<1x8x128xf32, #tpu.memory_space<vmem>>, vector<1x8x128xf32>,
    return
  }
  func.func @transform_0(%arg0: i32) -> (i32, i32) {
    %c0_i32 = arith.constant 0 : i32
    %c0_i32_0 = arith.constant 0 : i32
    return %arg0, %c0_i32 : i32, i32
  }
  func.func @transform_1(%arg0: i32) -> (i32, i32) {
    %c0_i32 = arith.constant 0 : i32
    %c0_i32_0 = arith.constant 0 : i32
    return %arg0, %c0_i32 : i32, i32
  }
  func.func @transform_2(%arg0: i32) -> (i32, i32) {
    %c0_i32 = arith.constant 0 : i32
    %c0_i32_0 = arith.constant 0 : i32
    return %arg0, %c0_i32 : i32, i32
  }
  func.func @transform_3(%arg0: i32) -> (i32, i32) {
    %c0_i32 = arith.constant 0 : i32
    %c0_i32_0 = arith.constant 0 : i32
    return %arg0, %c0_i32 : i32, i32
  }
  func.func @transform_4(%arg0: i32) -> (i32, i32, i32) {
    %c0_i32 = arith.constant 0 : i32
    %c0_i32_0 = arith.constant 0 : i32
    %c0_i32_1 = arith.constant 0 : i32
    return %arg0, %c0_i32, %c0_i32_0 : i32, i32, i32
  }
}

</mosaic_0001>

<llo_original>
// kernel: tpu_custom_call.1
$region0: #{tpu_custom_call.1}
  #allocation0 [shape = 'u32[]', space=smem, size = 0x4, offset = 0x4, fixed_abs, tag = 'smem constant byte address 0x4 - core index']
  #allocation1 [shape = 'u32[144,128]{1,0:T(1,128)}', space=vmem, size = 0x12000, scoped, tag = 'internal scratch']
  %s0 = inlined_call_operand.hbm [shape: f32[8,10], index: 0, kind: input, shape index: {}]
  %s1 = inlined_call_operand.vmem [shape: s32[8,1], index: 1, kind: input, shape index: {}]
  %s2 = inlined_call_operand.vmem [shape: f32[8,256], index: 2, kind: input, shape index: {}]
  %s3 = inlined_call_operand.hbm [shape: f32[8,256], index: 3, kind: input, shape index: {}]
  %s4 = inlined_call_operand.hbm [shape: f32[1,8,128], index: 4, kind: output, shape index: {}]
  %s5 = sld [smem:[#allocation0]]
  $region34: #{tpu_custom_call.1} parent=0
    _
  %s7 = ssub.s32 1, %s5
  %s8 = scalar_select 0, %s7, %s5
  $region1: #{tpu_custom_call.1} parent=0
    #allocation2 [shape = 'u8[4096]{0}', space=vmem, size = 0x1000, scoped, tag = 'input window, operand 0, single buffered']
    #allocation3 [shape = 's32[1]{0}', space=sflag, size = 0x4, scoped, tag = 'scoped memory for tpu_custom_call.1']
    #allocation4 [shape = 's32[1]{0}', space=sflag, size = 0x4, scoped, tag = 'scoped memory for tpu_custom_call.1']
    #allocation5 [shape = 'u8[8192]{0}', space=vmem, size = 0x2000, scoped, tag = 'input window, operand 3, single buffered']
    #allocation6 [shape = 's32[1]{0}', space=sflag, size = 0x4, scoped, tag = 'scoped memory for tpu_custom_call.1']
    #allocation7 [shape = 'u8[4096]{0}', space=vmem, size = 0x1000, scoped, tag = 'output window, operand 0, single buffered']
    %9 = vsyncpa [#allocation3], 0
    %10 = vsyncpa [#allocation6], 0
    %11 = vsyncpa [#allocation4], 0
    // Predicated region
    $region2: #{tpu_custom_call.1} parent=1 // pred_check
      _
    $region3: #{tpu_custom_call.1} parent=1 // pred_check_branch
      %13 = sbr.rel (0) target = $region5
    $region4: #{tpu_custom_call.1} parent=1 // pred_region
      %s15 = ssub.s32 128, 128
      %16 = vsyncadd [#allocation3], %s15
      %s18 = sshll.u32 [#allocation2], 4
      %s19 = int_to_ptr.vmem [resolvable:$true] %s18
      %21 = dma.hbm_to_vmem [thread:$0]  %s0, 128, %s19, [#allocation3]
    $region5: #{tpu_custom_call.1} parent=1 // pred_fallthru
      _
    // Predicated region
    $region6: #{tpu_custom_call.1} parent=1 // pred_check
      _
    $region7: #{tpu_custom_call.1} parent=1 // pred_check_branch
      %23 = sbr.rel (0) target = $region9
    $region8: #{tpu_custom_call.1} parent=1 // pred_region
      _
    $region9: #{tpu_custom_call.1} parent=1 // pred_fallthru
      _
    // Predicated region
    $region10: #{tpu_custom_call.1} parent=1 // pred_check
      _
    $region11: #{tpu_custom_call.1} parent=1 // pred_check_branch
      %25 = sbr.rel (0) target = $region13
    $region12: #{tpu_custom_call.1} parent=1 // pred_region
      _
    $region13: #{tpu_custom_call.1} parent=1 // pred_fallthru
      _
    // Predicated region
    $region14: #{tpu_custom_call.1} parent=1 // pred_check
      _
    $region15: #{tpu_custom_call.1} parent=1 // pred_check_branch
      %27 = sbr.rel (0) target = $region17
    $region16: #{tpu_custom_call.1} parent=1 // pred_region
      %s29 = ssub.s32 256, 256
      %30 = vsyncadd [#allocation6], %s29
      %s32 = sshll.u32 [#allocation5], 4
      %s33 = int_to_ptr.vmem [resolvable:$true] %s32
      %35 = dma.hbm_to_vmem [thread:$0]  %s3, 256, %s33, [#allocation6]
    $region17: #{tpu_custom_call.1} parent=1 // pred_fallthru
      _
    // Predicated region
    $region18: #{tpu_custom_call.1} parent=1 // pred_check
      _
    $region19: #{tpu_custom_call.1} parent=1 // pred_check_branch
      %37 = sbr.rel (0) target = $region21
    $region20: #{tpu_custom_call.1} parent=1 // pred_region
      %38 = dma.done [#allocation3], 128
    $region21: #{tpu_custom_call.1} parent=1 // pred_fallthru
      _
    // Predicated region
    $region22: #{tpu_custom_call.1} parent=1 // pred_check
      _
    $region23: #{tpu_custom_call.1} parent=1 // pred_check_branch
      %40 = sbr.rel (0) target = $region25
    $region24: #{tpu_custom_call.1} parent=1 // pred_region
      %41 = dma.done [#allocation6], 256
    $region25: #{tpu_custom_call.1} parent=1 // pred_fallthru
      _
    %v42 = vlaneseq
    %v43 = vand.u32 %v42, 127
    %v44 = vld [vmem:[#allocation2] sm:$0xff]
    %v45 = vld [vmem:[%s1] sm:$0xff]
    %46 = vset.pattern.permute.xlu0 0
    %47 = vperm.xlu0 %46, %v45
    %v48 = vpop.permute.xlu0 %47
    %vm49 = vcmp.eq.s32.totalorder %v43, %v48
    %v50 = vsel %vm49, 1, 0
    %v51 = vcvt.s32.f32 %v50
    %v52 = vsub.f32 0.9, %v44
    %v53 = vmax.f32 %v52, 0.0
    %v54 = vsub.f32 %v44, 0.1
    %v55 = vmax.f32 %v54, 0.0
    %v56 = vmul.f32 %v51, %v53
    %v57 = vmul.f32 %v56, %v53
    %v58 = vadd.f32 %v57, 0.0
    %v59 = vsub.f32 1.0, %v51
    %v60 = vmul.f32 %v59, 0.5
    %v61 = vmul.f32 %v60, %v55
    %v62 = vmul.f32 %v61, %v55
    %v63 = vadd.f32 %v58, %v62
    %s64 = smul.u32 0, 2
    %s65 = sadd.s32 0, %s64
    %s66 = smul.addr %s65, 8
    %s67 = scalar_lea.vmem %s2, %s66
    %v68 = vld [vmem:[%s67] sm:$0xff]
    %s69 = smul.addr %s65, 8
    %s70 = scalar_lea.vmem [#allocation5], %s69
    %v71 = vld [vmem:[%s70] sm:$0xff]
    %v72 = vsub.f32 %v68, %v71
    %v73 = vmul.f32 %v72, %v72
    %v74 = vadd.f32 %v73, 0.0
    %s75 = sadd.s32 1, %s64
    %s76 = smul.addr %s75, 8
    %s77 = scalar_lea.vmem %s2, %s76
    %v78 = vld [vmem:[%s77] sm:$0xff]
    %s79 = smul.addr %s75, 8
    %s80 = scalar_lea.vmem [#allocation5], %s79
    %v81 = vld [vmem:[%s80] sm:$0xff]
    %v82 = vsub.f32 %v78, %v81
    %v83 = vmul.f32 %v82, %v82
    %v84 = vadd.f32 %v74, %v83
    %vm85 = vcmask 80896
    %v86 = vsel %vm85, %v63, 0.0
    %87 = vadd.xlane.f32.xlu0 %v86
    %v88 = vpop.xlane.xlu0 %87
    %v89 = vrot.slane %v88, 4
    %v90 = vadd.f32 %v88, %v89
    %v91 = vrot.slane %v90, 2
    %v92 = vadd.f32 %v90, %v91
    %v93 = vrot.slane %v92, 1
    %v94 = vadd.f32 %v92, %v93
    %s95 = vtos %v94
    %s96 = smul.f32 %s95, 0.05
    %v97 = vmul.f32 %v84, 0.00025
    %v98 = vlaneseq
    %v99 = vshrl.u32 %v98, 7
    %vm100 = vcmp.eq.s32.totalorder %v99, 0
    %vm101 = vcmp.eq.s32.totalorder %v43, 0
    %vm102 = vmand %vm100, %vm101
    %v103 = vstv %s96
    %v104 = vsel %vm102, %v103, 0.0
    %v105 = vadd.f32 %v97, %v104
    %106 = vst [vmem:[#allocation7] sm:$0xff] %v105
    // Predicated region
    $region26: #{tpu_custom_call.1} parent=1 // pred_check
      _
    $region27: #{tpu_custom_call.1} parent=1 // pred_check_branch
      %108 = sbr.rel (0) target = $region29
    $region28: #{tpu_custom_call.1} parent=1 // pred_region
      %s110 = ssub.s32 128, 128
      %111 = vsyncadd [#allocation4], %s110
      %s113 = sshll.u32 [#allocation7], 4
      %s114 = int_to_ptr.vmem [resolvable:$true] %s113
      %116 = dma.vmem_to_hbm [thread:$0]  %s114, 128, %s4, [#allocation4]
    $region29: #{tpu_custom_call.1} parent=1 // pred_fallthru
      _
    // Predicated region
    $region30: #{tpu_custom_call.1} parent=1 // pred_check
      _
    $region31: #{tpu_custom_call.1} parent=1 // pred_check_branch
      %118 = sbr.rel (0) target = $region33
    $region32: #{tpu_custom_call.1} parent=1 // pred_region
      %119 = dma.done [#allocation4], 128
    $region33: #{tpu_custom_call.1} parent=1 // pred_fallthru
      _
    %120 = vsyncpa [#allocation3], 1
    %121 = vsyncpa [#allocation6], 1
    %122 = vsyncpa [#allocation4], 1

</llo_original>
